<compile_context>
chip_gen: v7x
topology: tpu7x:2x2x1
jax: 0.10.0
libtpu: 0.0.40
codegen_flags: <defaults>
</compile_context>

<pallas_src>
import functools

import jax
import jax.numpy as jnp
from jax.experimental import pallas as pl
from jax.experimental.pallas import tpu as pltpu

EPS = 1e-5
HPAD = 128          # lane-padded width for all hidden / output features
N_CLASSES = 10


def _round_up(a, b):
    return (a + b - 1) // b * b


def _vmem_capacity_bytes():
    """Physical VMEM per core; conservative 64 MiB fallback (valid on all gens)."""
    try:
        info = pltpu.get_tpu_info()
        cap = getattr(info, "vmem_capacity_bytes", None)
        if cap:
            return int(cap)
    except Exception:
        pass
    return 64 << 20


def _preferred_batch_tile():
    """128-row tiles saturate the 128x128 MXU (v2-v5); 256 fills v6e/v7x's 256^2."""
    try:
        kind = jax.devices()[0].device_kind.lower()
    except Exception:
        kind = ""
    if any(v in kind for v in ("v2", "v3", "v4", "v5")):
        return 128
    return 256


def _bn_relu_fused(h, gamma, beta, inv_b):
    """Training-mode BatchNorm1d (batch stats, biased var) + ReLU, fused.

    One reduction pass (sum & sumsq together, f32), one scale/shift pass.
    Padded feature lanes (all-zero columns, gamma=beta=0) stay exactly zero.
    """
    s = jnp.sum(h, axis=0, keepdims=True)
    s2 = jnp.sum(h * h, axis=0, keepdims=True)
    mean = s * inv_b
    var = s2 * inv_b - mean * mean                 # biased variance
    scale = gamma * jax.lax.rsqrt(var + EPS)
    shift = beta - mean * scale
    return jnp.maximum(h * scale + shift, 0.0)


def model_d_kernel(x_ref, w0_ref, w1_ref, w2_ref, gb_ref, out_ref, h1_ref,
                   *, tile_b, n_valid):
    """Grid axis = batch tiles.  Every step: layer-1 matmul for its tile
    (bf16 x bf16 -> f32) into the resident h1 scratch.  Last step: BN1/ReLU,
    layers 2 & 3 + BN/ReLU, log-softmax, bf16 writeback."""
    i = pl.program_id(0)
    row0 = pl.multiple_of(i * tile_b, tile_b)
    h1_ref[pl.ds(row0, tile_b), :] = jnp.dot(
        x_ref[...], w0_ref[...], preferred_element_type=jnp.float32)

    @pl.when(i == pl.num_programs(0) - 1)
    def _():
        gb = gb_ref[...]                           # (8, 128) packed gamma/beta
        bp = h1_ref.shape[0]
        inv_b = 1.0 / n_valid                      # real batch size (static)

        # Row mask keeps batch-padding rows at exactly 0 between layers so
        # they never pollute the next layer's BN statistics.
        if bp > n_valid:
            rowmask = (jax.lax.broadcasted_iota(jnp.int32, (bp, 1), 0)
                       < n_valid).astype(jnp.float32)
        else:
            rowmask = None

        h = _bn_relu_fused(h1_ref[...], gb[0:1, :], gb[1:2, :], inv_b)
        if rowmask is not None:
            h = h * rowmask

        h = jnp.dot(h, w1_ref[...], preferred_element_type=jnp.float32)
        h = _bn_relu_fused(h, gb[2:3, :], gb[3:4, :], inv_b)
        if rowmask is not None:
            h = h * rowmask

        h = jnp.dot(h, w2_ref[...], preferred_element_type=jnp.float32)
        h = _bn_relu_fused(h, gb[4:5, :], gb[5:6, :], inv_b)

        # log_softmax over the 10 real classes; padded lanes masked to -inf.
        lane = jax.lax.broadcasted_iota(jnp.int32, h.shape, 1)
        hm = jnp.where(lane < N_CLASSES, h, -jnp.inf)
        m = jnp.max(hm, axis=-1, keepdims=True)
        z = hm - m
        lse = jnp.log(jnp.sum(jnp.exp(z), axis=-1, keepdims=True))
        out_ref[...] = (z - lse).astype(out_ref.dtype)   # lane-dense bf16 slab


def prepare_params(params, image_size):
    """Pad weights to 128 lanes (w0 in bf16), pack gamma/beta, drop biases."""
    w0p = jnp.zeros((image_size, HPAD), jnp.float32).at[:, :100].set(params["w0"])
    w0p = w0p.astype(jnp.bfloat16)
    w1p = jnp.zeros((HPAD, HPAD), jnp.float32).at[:100, :50].set(params["w1"])
    w2p = jnp.zeros((HPAD, HPAD), jnp.float32).at[:50, :10].set(params["w2"])
    gb = jnp.zeros((8, HPAD), jnp.float32)           # pad lanes: gamma=beta=0
    gb = gb.at[0, :100].set(params["g0"][0])
    gb = gb.at[1, :100].set(params["be0"][0])
    gb = gb.at[2, :50].set(params["g1"][0])
    gb = gb.at[3, :50].set(params["be1"][0])
    gb = gb.at[4, :10].set(params["g2"][0])
    gb = gb.at[5, :10].set(params["be2"][0])
    return w0p, w1p, w2p, gb


@functools.partial(jax.jit, static_argnames=("image_size", "tile_b", "vmem_cap"))
def _forward_impl(x, w0p, w1p, w2p, gb, *, image_size, tile_b, vmem_cap):
    x2 = x.reshape(-1, image_size)
    B = x2.shape[0]
    TB = min(tile_b, _round_up(B, 8))              # batch tile (>= 8 sublanes)
    Bp = _round_up(B, TB)
    num_chunks = Bp // TB

    xb = x2.astype(jnp.bfloat16)                   # bf16 input: dominant HBM op
    if Bp != B:
        xb = jnp.pad(xb, ((0, Bp - B), (0, 0)))    # zero rows -> zero h1 rows

    bf, f4 = 2, 4
    # Footprint: double-buffered bf16 x tile, resident (but 2-buffer-allocated)
    # weights / gamma-beta, bf16 output slab, f32 h1 scratch, live activation
    # temporaries, plus compiler scratch margin.  No blanket 2x factor.
    needed = (2 * TB * image_size * bf
              + 2 * image_size * HPAD * bf
              + 2 * 2 * HPAD * HPAD * f4
              + 2 * 8 * HPAD * f4
              + Bp * HPAD * bf
              + Bp * HPAD * f4
              + 4 * Bp * HPAD * f4
              + (8 << 20))
    vmem_bytes = int(min(int(0.85 * vmem_cap), max(32 << 20, needed)))

    cost = pl.CostEstimate(
        flops=2 * Bp * HPAD * (image_size + 2 * HPAD),
        transcendentals=Bp * HPAD + 6 * HPAD,
        bytes_accessed=(Bp * image_size * bf + image_size * HPAD * bf
                        + 2 * HPAD * HPAD * f4 + 8 * HPAD * f4
                        + Bp * HPAD * bf))

    kernel = functools.partial(model_d_kernel, tile_b=TB, n_valid=B)
    out_padded = pl.pallas_call(
        kernel,
        out_shape=jax.ShapeDtypeStruct((Bp, HPAD), jnp.bfloat16),
        grid=(num_chunks,),
        in_specs=[
            pl.BlockSpec((TB, image_size), lambda i: (i, 0)),      # x: streamed
            pl.BlockSpec((image_size, HPAD), lambda i: (0, 0)),    # w0 (bf16)
            pl.BlockSpec((HPAD, HPAD), lambda i: (0, 0)),          # w1 (f32)
            pl.BlockSpec((HPAD, HPAD), lambda i: (0, 0)),          # w2 (f32)
            pl.BlockSpec((8, HPAD), lambda i: (0, 0)),             # gamma/beta
        ],
        out_specs=pl.BlockSpec((Bp, HPAD), lambda i: (0, 0)),      # resident
        scratch_shapes=[pltpu.VMEM((Bp, HPAD), jnp.float32)],      # h1
        compiler_params=pltpu.CompilerParams(
            dimension_semantics=("arbitrary",),    # last step consumes all h1
            vmem_limit_bytes=vmem_bytes),
        cost_estimate=cost,
    )(xb, w0p, w1p, w2p, gb)

    return out_padded[:B, :N_CLASSES].astype(jnp.float32)


def model_d_forward(x, prepared, *, image_size):
    """x: any shape with prod(trailing dims) == image_size per sample."""
    return _forward_impl(x, *prepared, image_size=image_size,
                         tile_b=_preferred_batch_tile(),
                         vmem_cap=_vmem_capacity_bytes())


def init_params(key, image_size):
    """PyTorch-default init: Linear U(-1/sqrt(fan_in), +) for weight and bias;
    BatchNorm1d gamma=1, beta=0.  Weights stored (in, out)."""
    dims = [(image_size, 100), (100, 50), (50, 10)]
    params = {}
    for i, (fan_in, fan_out) in enumerate(dims):
        key, kw, kb = jax.random.split(key, 3)
        bound = 1.0 / jnp.sqrt(jnp.float32(fan_in))
        params[f"w{i}"] = jax.random.uniform(
            kw, (fan_in, fan_out), jnp.float32, -bound, bound)
        params[f"b{i}"] = jax.random.uniform(
            kb, (1, fan_out), jnp.float32, -bound, bound)
        params[f"g{i}"] = jnp.ones((1, fan_out), jnp.float32)
        params[f"be{i}"] = jnp.zeros((1, fan_out), jnp.float32)
    return params


def _ref_forward(x, params, image_size):
    """Pure-JAX f32 reference (includes linear biases, like the PyTorch module)."""
    x2 = x.reshape(-1, image_size).astype(jnp.float32)

    def bn_relu(h, g, b):
        m = jnp.mean(h, axis=0, keepdims=True)
        v = jnp.mean((h - m) ** 2, axis=0, keepdims=True)
        return jnp.maximum((h - m) / jnp.sqrt(v + EPS) * g + b, 0.0)

    hi = jax.lax.Precision.HIGHEST
    h = bn_relu(jnp.dot(x2, params["w0"], precision=hi) + params["b0"],
                params["g0"], params["be0"])
    h = bn_relu(jnp.dot(h, params["w1"], precision=hi) + params["b1"],
                params["g1"], params["be1"])
    h = bn_relu(jnp.dot(h, params["w2"], precision=hi) + params["b2"],
                params["g2"], params["be2"])
    return jax.nn.log_softmax(h, axis=1)


if __name__ == "__main__":
    IMAGE_SIZE = 64          # e.g. 1x8x8 images flattened

    params = init_params(jax.random.PRNGKey(0), IMAGE_SIZE)
    prepared = prepare_params(params, IMAGE_SIZE)

    key = jax.random.PRNGKey(0)

    # Case 1: tiny batch (single grid step), NCHW input.
    key, kx = jax.random.split(key)
    x = jax.random.normal(kx, (8, 1, 8, 8), jnp.float32)
    out = jax.block_until_ready(model_d_forward(x, prepared, image_size=IMAGE_SIZE))
    assert out.shape == (8, 10)
    assert jnp.allclose(jnp.sum(jnp.exp(out), axis=1), 1.0, atol=2e-2)
    ref = _ref_forward(x, params, IMAGE_SIZE)
    assert jnp.allclose(out, ref, atol=5e-2, rtol=5e-2)   # bf16 input/output path

    # Case 2: batch > tile -> exercises the multi-step grid, streamed x tiles,
    # resident h1 scratch and the padded-row masking.
    key, kx2 = jax.random.split(key)
    x2 = jax.random.normal(kx2, (300, IMAGE_SIZE), jnp.float32)
    out2 = jax.block_until_ready(model_d_forward(x2, prepared, image_size=IMAGE_SIZE))
    assert out2.shape == (300, 10)
    assert jnp.allclose(jnp.sum(jnp.exp(out2), axis=1), 1.0, atol=2e-2)
    ref2 = _ref_forward(x2, params, IMAGE_SIZE)
    assert jnp.allclose(out2, ref2, atol=5e-2, rtol=5e-2)

    print("KERNEL_OK")
</pallas_src>

<mosaic_0001>
module attributes {stable_mosaic.version = 11 : i64} {
  func.func @model_d_kernel(%arg0: i32, %arg1: memref<8x64xbf16, #tpu.memory_space<vmem>>, %arg2: memref<64x128xbf16, #tpu.memory_space<vmem>>, %arg3: memref<128x128xf32, #tpu.memory_space<vmem>>, %arg4: memref<128x128xf32, #tpu.memory_space<vmem>>, %arg5: memref<8x128xf32, #tpu.memory_space<vmem>>, %arg6: memref<8x128xbf16, #tpu.memory_space<vmem>>, %arg7: memref<8x128xf32, #tpu.memory_space<vmem>>) attributes {dimension_semantics = [#tpu.dimension_semantics<arbitrary>], iteration_bounds = array<i64: 1>, scalar_prefetch = 0 : i64, scratch_operands = 1 : i64, tpu.core_type = #tpu.core_type<tc>, window_params = [{transform_indices = @transform_0, window_bounds = array<i64: 8, 64>}, {pipeline_mode = #tpu.pipeline_mode<synchronous>, transform_indices = @transform_1, window_bounds = array<i64: 64, 128>}, {pipeline_mode = #tpu.pipeline_mode<synchronous>, transform_indices = @transform_2, window_bounds = array<i64: 128, 128>}, {pipeline_mode = #tpu.pipeline_mode<synchronous>, transform_indices = @transform_3, window_bounds = array<i64: 128, 128>}, {pipeline_mode = #tpu.pipeline_mode<synchronous>, transform_indices = @transform_4, window_bounds = array<i64: 8, 128>}, {pipeline_mode = #tpu.pipeline_mode<synchronous>, transform_indices = @transform_5, window_bounds = array<i64: 8, 128>}]} {
    %c8_i32 = arith.constant 8 : i32
    %0 = arith.muli %arg0, %c8_i32 : i32
    %1 = tpu.assume_multiple %0, 8 : i32
    %c0 = arith.constant 0 : index
    %c0_0 = arith.constant 0 : index
    %2 = vector.load %arg1[%c0, %c0_0] : memref<8x64xbf16, #tpu.memory_space<vmem>>, vector<8x64xbf16>
    %c0_1 = arith.constant 0 : index
    %c0_2 = arith.constant 0 : index
    %3 = vector.load %arg2[%c0_1, %c0_2] : memref<64x128xbf16, #tpu.memory_space<vmem>>, vector<64x128xbf16>
    %cst = arith.constant dense<0.000000e+00> : vector<8x128xf32>
    %4 = tpu.matmul %2, %3, %cst {dimension_numbers = #tpu.dot_dimension_numbers<[1], [0], [0], [1], [0, 0, 1, 1], [], []>} : vector<8x64xbf16>, vector<64x128xbf16>, vector<8x128xf32> -> vector<8x128xf32>
    %5 = arith.index_cast %1 : i32 to index
    %c0_3 = arith.constant 0 : index
    %6 = vector.load %arg7[%5, %c0_3] : memref<8x128xf32, #tpu.memory_space<vmem>>, vector<8x128xf32>
    tpu.vector_store %arg7[%5, %c0_3], %4 {strides = array<i32>} : memref<8x128xf32, #tpu.memory_space<vmem>>, vector<8x128xf32>,
    %c0_i32 = arith.constant 0 : i32
    %7 = arith.cmpi eq, %arg0, %c0_i32 : i32
    %8 = arith.extui %7 : i1 to i32
    %c0_i32_4 = arith.constant 0 : i32
    %9 = arith.cmpi ne, %8, %c0_i32_4 : i32
    scf.if %9 {
      %c0_5 = arith.constant 0 : index
      %c0_6 = arith.constant 0 : index
      %10 = vector.load %arg5[%c0_5, %c0_6] : memref<8x128xf32, #tpu.memory_space<vmem>>, vector<8x128xf32>
      %c0_7 = arith.constant 0 : index
      %c0_8 = arith.constant 0 : index
      %11 = vector.load %arg7[%c0_7, %c0_8] : memref<8x128xf32, #tpu.memory_space<vmem>>, vector<8x128xf32>
      %12 = vector.extract_strided_slice %10 {offsets = [0, 0], sizes = [1, 128], strides = [1, 1]} : vector<8x128xf32> to vector<1x128xf32>
      %13 = vector.extract_strided_slice %10 {offsets = [1, 0], sizes = [1, 128], strides = [1, 1]} : vector<8x128xf32> to vector<1x128xf32>
      %cst_9 = arith.constant dense<0.000000e+00> : vector<128xf32>
      %14 = vector.multi_reduction <add>, %11, %cst_9 [0] : vector<8x128xf32> to vector<128xf32>
      %15 = vector.shape_cast %14 : vector<128xf32> to vector<1x128xf32>
      %16 = arith.mulf %11, %11 : vector<8x128xf32>
      %cst_10 = arith.constant dense<0.000000e+00> : vector<128xf32>
      %17 = vector.multi_reduction <add>, %16, %cst_10 [0] : vector<8x128xf32> to vector<128xf32>
      %18 = vector.shape_cast %17 : vector<128xf32> to vector<1x128xf32>
      %cst_11 = arith.constant 1.250000e-01 : f32
      %19 = vector.broadcast %cst_11 : f32 to vector<1x128xf32>
      %20 = arith.mulf %15, %19 : vector<1x128xf32>
      %cst_12 = arith.constant 1.250000e-01 : f32
      %21 = vector.broadcast %cst_12 : f32 to vector<1x128xf32>
      %22 = arith.mulf %18, %21 : vector<1x128xf32>
      %23 = arith.mulf %20, %20 : vector<1x128xf32>
      %24 = arith.subf %22, %23 : vector<1x128xf32>
      %cst_13 = arith.constant 9.99999974E-6 : f32
      %25 = vector.broadcast %cst_13 : f32 to vector<1x128xf32>
      %26 = arith.addf %24, %25 : vector<1x128xf32>
      %27 = math.rsqrt %26 : vector<1x128xf32>
      %28 = arith.mulf %12, %27 : vector<1x128xf32>
      %29 = arith.mulf %20, %28 : vector<1x128xf32>
      %30 = arith.subf %13, %29 : vector<1x128xf32>
      %31 = vector.broadcast %28 : vector<1x128xf32> to vector<8x128xf32>
      %32 = arith.mulf %11, %31 : vector<8x128xf32>
      %33 = vector.broadcast %30 : vector<1x128xf32> to vector<8x128xf32>
      %34 = arith.addf %32, %33 : vector<8x128xf32>
      %cst_14 = arith.constant 0.000000e+00 : f32
      %35 = vector.broadcast %cst_14 : f32 to vector<8x128xf32>
      %36 = arith.maximumf %34, %35 : vector<8x128xf32>
      %c0_15 = arith.constant 0 : index
      %c0_16 = arith.constant 0 : index
      %37 = vector.load %arg3[%c0_15, %c0_16] : memref<128x128xf32, #tpu.memory_space<vmem>>, vector<128x128xf32>
      %cst_17 = arith.constant dense<0.000000e+00> : vector<8x128xf32>
      %38 = tpu.matmul %36, %37, %cst_17 {dimension_numbers = #tpu.dot_dimension_numbers<[1], [0], [0], [1], [0, 0, 1, 1], [], []>} : vector<8x128xf32>, vector<128x128xf32>, vector<8x128xf32> -> vector<8x128xf32>
      %39 = vector.extract_strided_slice %10 {offsets = [2, 0], sizes = [1, 128], strides = [1, 1]} : vector<8x128xf32> to vector<1x128xf32>
      %40 = vector.extract_strided_slice %10 {offsets = [3, 0], sizes = [1, 128], strides = [1, 1]} : vector<8x128xf32> to vector<1x128xf32>
      %cst_18 = arith.constant dense<0.000000e+00> : vector<128xf32>
      %41 = vector.multi_reduction <add>, %38, %cst_18 [0] : vector<8x128xf32> to vector<128xf32>
      %42 = vector.shape_cast %41 : vector<128xf32> to vector<1x128xf32>
      %43 = arith.mulf %38, %38 : vector<8x128xf32>
      %cst_19 = arith.constant dense<0.000000e+00> : vector<128xf32>
      %44 = vector.multi_reduction <add>, %43, %cst_19 [0] : vector<8x128xf32> to vector<128xf32>
      %45 = vector.shape_cast %44 : vector<128xf32> to vector<1x128xf32>
      %cst_20 = arith.constant 1.250000e-01 : f32
      %46 = vector.broadcast %cst_20 : f32 to vector<1x128xf32>
      %47 = arith.mulf %42, %46 : vector<1x128xf32>
      %cst_21 = arith.constant 1.250000e-01 : f32
      %48 = vector.broadcast %cst_21 : f32 to vector<1x128xf32>
      %49 = arith.mulf %45, %48 : vector<1x128xf32>
      %50 = arith.mulf %47, %47 : vector<1x128xf32>
      %51 = arith.subf %49, %50 : vector<1x128xf32>
      %cst_22 = arith.constant 9.99999974E-6 : f32
      %52 = vector.broadcast %cst_22 : f32 to vector<1x128xf32>
      %53 = arith.addf %51, %52 : vector<1x128xf32>
      %54 = math.rsqrt %53 : vector<1x128xf32>
      %55 = arith.mulf %39, %54 : vector<1x128xf32>
      %56 = arith.mulf %47, %55 : vector<1x128xf32>
      %57 = arith.subf %40, %56 : vector<1x128xf32>
      %58 = vector.broadcast %55 : vector<1x128xf32> to vector<8x128xf32>
      %59 = arith.mulf %38, %58 : vector<8x128xf32>
      %60 = vector.broadcast %57 : vector<1x128xf32> to vector<8x128xf32>
      %61 = arith.addf %59, %60 : vector<8x128xf32>
      %cst_23 = arith.constant 0.000000e+00 : f32
      %62 = vector.broadcast %cst_23 : f32 to vector<8x128xf32>
      %63 = arith.maximumf %61, %62 : vector<8x128xf32>
      %c0_24 = arith.constant 0 : index
      %c0_25 = arith.constant 0 : index
      %64 = vector.load %arg4[%c0_24, %c0_25] : memref<128x128xf32, #tpu.memory_space<vmem>>, vector<128x128xf32>
      %cst_26 = arith.constant dense<0.000000e+00> : vector<8x128xf32>
      %65 = tpu.matmul %63, %64, %cst_26 {dimension_numbers = #tpu.dot_dimension_numbers<[1], [0], [0], [1], [0, 0, 1, 1], [], []>} : vector<8x128xf32>, vector<128x128xf32>, vector<8x128xf32> -> vector<8x128xf32>
      %66 = vector.extract_strided_slice %10 {offsets = [4, 0], sizes = [1, 128], strides = [1, 1]} : vector<8x128xf32> to vector<1x128xf32>
      %67 = vector.extract_strided_slice %10 {offsets = [5, 0], sizes = [1, 128], strides = [1, 1]} : vector<8x128xf32> to vector<1x128xf32>
      %cst_27 = arith.constant dense<0.000000e+00> : vector<128xf32>
      %68 = vector.multi_reduction <add>, %65, %cst_27 [0] : vector<8x128xf32> to vector<128xf32>
      %69 = vector.shape_cast %68 : vector<128xf32> to vector<1x128xf32>
      %70 = arith.mulf %65, %65 : vector<8x128xf32>
      %cst_28 = arith.constant dense<0.000000e+00> : vector<128xf32>
      %71 = vector.multi_reduction <add>, %70, %cst_28 [0] : vector<8x128xf32> to vector<128xf32>
      %72 = vector.shape_cast %71 : vector<128xf32> to vector<1x128xf32>
      %cst_29 = arith.constant 1.250000e-01 : f32
      %73 = vector.broadcast %cst_29 : f32 to vector<1x128xf32>
      %74 = arith.mulf %69, %73 : vector<1x128xf32>
      %cst_30 = arith.constant 1.250000e-01 : f32
      %75 = vector.broadcast %cst_30 : f32 to vector<1x128xf32>
      %76 = arith.mulf %72, %75 : vector<1x128xf32>
      %77 = arith.mulf %74, %74 : vector<1x128xf32>
      %78 = arith.subf %76, %77 : vector<1x128xf32>
      %cst_31 = arith.constant 9.99999974E-6 : f32
      %79 = vector.broadcast %cst_31 : f32 to vector<1x128xf32>
      %80 = arith.addf %78, %79 : vector<1x128xf32>
      %81 = math.rsqrt %80 : vector<1x128xf32>
      %82 = arith.mulf %66, %81 : vector<1x128xf32>
      %83 = arith.mulf %74, %82 : vector<1x128xf32>
      %84 = arith.subf %67, %83 : vector<1x128xf32>
      %85 = vector.broadcast %82 : vector<1x128xf32> to vector<8x128xf32>
      %86 = arith.mulf %65, %85 : vector<8x128xf32>
      %87 = vector.broadcast %84 : vector<1x128xf32> to vector<8x128xf32>
      %88 = arith.addf %86, %87 : vector<8x128xf32>
      %cst_32 = arith.constant 0.000000e+00 : f32
      %89 = vector.broadcast %cst_32 : f32 to vector<8x128xf32>
      %90 = arith.maximumf %88, %89 : vector<8x128xf32>
      %91 = tpu.iota {dimensions = array<i32: 1>} : vector<8x128xi32>
      %c10_i32 = arith.constant 10 : i32
      %92 = vector.broadcast %c10_i32 : i32 to vector<8x128xi32>
      %93 = arith.cmpi slt, %91, %92 : vector<8x128xi32>
      %cst_33 = arith.constant 0xFF800000 : f32
      %94 = vector.broadcast %cst_33 : f32 to vector<8x128xf32>
      %95 = arith.select %93, %90, %94 : vector<8x128xi1>, vector<8x128xf32>
      %cst_34 = arith.constant dense<0xFF800000> : vector<8xf32>
      %96 = vector.multi_reduction <maximumf>, %95, %cst_34 [1] : vector<8x128xf32> to vector<8xf32>
      %97 = vector.shape_cast %96 : vector<8xf32> to vector<8x1xf32>
      %98 = vector.broadcast %97 : vector<8x1xf32> to vector<8x128xf32>
      %99 = arith.subf %95, %98 : vector<8x128xf32>
      %100 = math.exp %99 : vector<8x128xf32>
      %cst_35 = arith.constant dense<0.000000e+00> : vector<8xf32>
      %101 = vector.multi_reduction <add>, %100, %cst_35 [1] : vector<8x128xf32> to vector<8xf32>
      %102 = vector.shape_cast %101 : vector<8xf32> to vector<8x1xf32>
      %103 = math.log %102 : vector<8x1xf32>
      %104 = vector.broadcast %103 : vector<8x1xf32> to vector<8x128xf32>
      %105 = arith.subf %99, %104 : vector<8x128xf32>
      %106 = arith.truncf %105 : vector<8x128xf32> to vector<8x128xbf16>
      %c0_36 = arith.constant 0 : index
      %c0_37 = arith.constant 0 : index
      %107 = vector.load %arg6[%c0_36, %c0_37] : memref<8x128xbf16, #tpu.memory_space<vmem>>, vector<8x128xbf16>
      tpu.vector_store %arg6[%c0_36, %c0_37], %106 {strides = array<i32>} : memref<8x128xbf16, #tpu.memory_space<vmem>>, vector<8x128xbf16>,
    } else {
    }
    return
  }
  func.func @transform_0(%arg0: i32) -> (i32, i32) {
    %c0_i32 = arith.constant 0 : i32
    %c0_i32_0 = arith.constant 0 : i32
    return %arg0, %c0_i32 : i32, i32
  }
  func.func @transform_1(%arg0: i32) -> (i32, i32) {
    %c0_i32 = arith.constant 0 : i32
    %c0_i32_0 = arith.constant 0 : i32
    %c0_i32_1 = arith.constant 0 : i32
    return %c0_i32, %c0_i32_0 : i32, i32
  }
  func.func @transform_2(%arg0: i32) -> (i32, i32) {
    %c0_i32 = arith.constant 0 : i32
    %c0_i32_0 = arith.constant 0 : i32
    %c0_i32_1 = arith.constant 0 : i32
    return %c0_i32, %c0_i32_0 : i32, i32
  }
  func.func @transform_3(%arg0: i32) -> (i32, i32) {
    %c0_i32 = arith.constant 0 : i32
    %c0_i32_0 = arith.constant 0 : i32
    %c0_i32_1 = arith.constant 0 : i32
    return %c0_i32, %c0_i32_0 : i32, i32
  }
  func.func @transform_4(%arg0: i32) -> (i32, i32) {
    %c0_i32 = arith.constant 0 : i32
    %c0_i32_0 = arith.constant 0 : i32
    %c0_i32_1 = arith.constant 0 : i32
    return %c0_i32, %c0_i32_0 : i32, i32
  }
  func.func @transform_5(%arg0: i32) -> (i32, i32) {
    %c0_i32 = arith.constant 0 : i32
    %c0_i32_0 = arith.constant 0 : i32
    %c0_i32_1 = arith.constant 0 : i32
    return %c0_i32, %c0_i32_0 : i32, i32
  }
}

</mosaic_0001>

<llo_original>
// kernel: _forward_impl.1
$region0: #{_forward_impl.1}
  #allocation0 [shape = 'u32[]', space=smem, size = 0x4, offset = 0x4, fixed_abs, tag = 'smem constant byte address 0x4 - core index']
  #allocation1 [shape = 'u32[144,128]{1,0:T(1,128)}', space=vmem, size = 0x12000, scoped, tag = 'internal scratch']
  #allocation2 [shape = 'f32[8,128]{1,0:T(8,128)}', space=vmem, size = 0x1000, scoped, tag = 'scratch operand']
  %s0 = inlined_call_operand.vmem [shape: bf16[8,64], index: 0, kind: input, shape index: {}]
  %s1 = inlined_call_operand.hbm [shape: bf16[64,128], index: 1, kind: input, shape index: {}]
  %s2 = inlined_call_operand.vmem [shape: f32[128,128], index: 2, kind: input, shape index: {}]
  %s3 = inlined_call_operand.hbm [shape: f32[128,128], index: 3, kind: input, shape index: {}]
  %s4 = inlined_call_operand.vmem [shape: f32[8,128], index: 4, kind: input, shape index: {}]
  %s5 = inlined_call_operand.vmem [shape: bf16[8,128], index: 5, kind: output, shape index: {}]
  %s6 = sld [smem:[#allocation0]]
  $region42: #{_forward_impl.1} parent=0
    _
  %s8 = ssub.s32 1, %s6
  %s9 = scalar_select 0, %s8, %s6
  $region1: #{_forward_impl.1} parent=0
    #allocation3 [shape = 'u8[16384]{0}', space=vmem, size = 0x4000, scoped, tag = 'input window, operand 1, single buffered']
    #allocation4 [shape = 's32[1]{0}', space=sflag, size = 0x4, scoped, tag = 'scoped memory for _forward_impl.1']
    #allocation5 [shape = 'u8[65536]{0}', space=vmem, size = 0x10000, scoped, tag = 'input window, operand 3, single buffered']
    #allocation6 [shape = 's32[1]{0}', space=sflag, size = 0x4, scoped, tag = 'scoped memory for _forward_impl.1']
    %10 = vsyncpa [#allocation4], 0
    %11 = vsyncpa [#allocation6], 0
    // Predicated region
    $region2: #{_forward_impl.1} parent=1 // pred_check
      _
    $region3: #{_forward_impl.1} parent=1 // pred_check_branch
      %13 = sbr.rel (0) target = $region5
    $region4: #{_forward_impl.1} parent=1 // pred_region
      _
    $region5: #{_forward_impl.1} parent=1 // pred_fallthru
      _
    // Predicated region
    $region6: #{_forward_impl.1} parent=1 // pred_check
      _
    $region7: #{_forward_impl.1} parent=1 // pred_check_branch
      %15 = sbr.rel (0) target = $region9
    $region8: #{_forward_impl.1} parent=1 // pred_region
      %s17 = ssub.s32 512, 512
      %18 = vsyncadd [#allocation4], %s17
      %s19 = sshll.u32 [#allocation3], 4
      %s20 = int_to_ptr.vmem [resolvable:$true] %s19
      %25 = dma.hbm_to_vmem [thread:$0]  %s1, 512, %s20, [#allocation4], 64, 64, 4
    $region9: #{_forward_impl.1} parent=1 // pred_fallthru
      _
    // Predicated region
    $region10: #{_forward_impl.1} parent=1 // pred_check
      _
    $region11: #{_forward_impl.1} parent=1 // pred_check_branch
      %27 = sbr.rel (0) target = $region13
    $region12: #{_forward_impl.1} parent=1 // pred_region
      _
    $region13: #{_forward_impl.1} parent=1 // pred_fallthru
      _
    // Predicated region
    $region14: #{_forward_impl.1} parent=1 // pred_check
      _
    $region15: #{_forward_impl.1} parent=1 // pred_check_branch
      %29 = sbr.rel (0) target = $region17
    $region16: #{_forward_impl.1} parent=1 // pred_region
      %s31 = ssub.s32 2048, 2048
      %32 = vsyncadd [#allocation6], %s31
      %s33 = sshll.u32 [#allocation5], 4
      %s34 = int_to_ptr.vmem [resolvable:$true] %s33
      %39 = dma.hbm_to_vmem [thread:$0]  %s3, 2048, %s34, [#allocation6], 128, 128, 8
    $region17: #{_forward_impl.1} parent=1 // pred_fallthru
      _
    // Predicated region
    $region18: #{_forward_impl.1} parent=1 // pred_check
      _
    $region19: #{_forward_impl.1} parent=1 // pred_check_branch
      %41 = sbr.rel (0) target = $region21
    $region20: #{_forward_impl.1} parent=1 // pred_region
      _
    $region21: #{_forward_impl.1} parent=1 // pred_fallthru
      _
    // Predicated region
    $region22: #{_forward_impl.1} parent=1 // pred_check
      _
    $region23: #{_forward_impl.1} parent=1 // pred_check_branch
      %43 = sbr.rel (0) target = $region25
    $region24: #{_forward_impl.1} parent=1 // pred_region
      %44 = dma.done [#allocation4], 512
    $region25: #{_forward_impl.1} parent=1 // pred_fallthru
      _
    // Predicated region
    $region26: #{_forward_impl.1} parent=1 // pred_check
      _
    $region27: #{_forward_impl.1} parent=1 // pred_check_branch
      %46 = sbr.rel (0) target = $region29
    $region28: #{_forward_impl.1} parent=1 // pred_region
      %47 = dma.done [#allocation6], 2048
    $region29: #{_forward_impl.1} parent=1 // pred_fallthru
      _
    %s49 = smul.u32 0, 8
    %v50 = vld [vmem:[%s0] sm:$0xf]
    %v51 = vld [vmem:[#allocation3] sm:$0xf]
    %v52 = vld [vmem:[#allocation3 + $0x4] sm:$0xf]
    %v53 = vld [vmem:[#allocation3 + $0x8] sm:$0xf]
    %v54 = vld [vmem:[#allocation3 + $0xc] sm:$0xf]
    %v55 = vld [vmem:[#allocation3 + $0x10] sm:$0xf]
    %v56 = vld [vmem:[#allocation3 + $0x14] sm:$0xf]
    %v57 = vld [vmem:[#allocation3 + $0x18] sm:$0xf]
    %v58 = vld [vmem:[#allocation3 + $0x1c] sm:$0xf]
    %v67 = vunpack.c.l.b16 %v51
    %v68 = vunpack.c.l.b16 %v52
    %v69 = vunpack.c.l.b16 %v53
    %v70 = vunpack.c.l.b16 %v54
    %v71 = vunpack.c.l.b16 %v55
    %v72 = vunpack.c.l.b16 %v56
    %v73 = vunpack.c.l.b16 %v57
    %v74 = vunpack.c.l.b16 %v58
    %v75 = vpack.c.b16 %v68, %v67
    %v76 = vpack.c.b16 %v70, %v69
    %v77 = vpack.c.b16 %v72, %v71
    %v78 = vpack.c.b16 %v74, %v73
    %vm83 = vcmask 523264
    %v85 = vsel %vm83, %v50, 0
    %87 = vmatprep.subr.bf16.mxu0 0
    %88 = vmatpush1.bf16.msra.mxu0 %v75
    %89 = vmatprep.subr.bf16.mxu0 0
    %90 = vmatpush1.bf16.msra.mxu0 %v76
    %91 = vmatprep.subr.bf16.mxu0 0
    %92 = vmatpush1.bf16.msra.mxu0 %v77
    %93 = vmatprep.subr.bf16.mxu0 0
    %94 = vmatpush1.bf16.msra.mxu0 %v78
    %95 = vmatprep.subr.bf16.mxu0 0
    %96 = vmatpush1.bf16.msra.mxu0 0
    %97 = vmatprep.subr.bf16.mxu0 0
    %98 = vmatpush1.bf16.msra.mxu0 0
    %99 = vmatprep.subr.bf16.mxu0 0
    %100 = vmatpush1.bf16.msra.mxu0 0
    %101 = vmatprep.subr.bf16.mxu0 0
    %102 = vmatpush1.bf16.msra.mxu0 0
    %103 = vmatprep.subr.bf16.mxu0 0
    %104 = vmatpush1.bf16.msra.mxu0 0
    %105 = vmatprep.subr.bf16.mxu0 0
    %106 = vmatpush1.bf16.msra.mxu0 0
    %107 = vmatprep.subr.bf16.mxu0 0
    %108 = vmatpush1.bf16.msra.mxu0 0
    %109 = vmatprep.subr.bf16.mxu0 0
    %110 = vmatpush1.bf16.msra.mxu0 0
    %111 = vmatprep.subr.bf16.mxu0 0
    %112 = vmatpush1.bf16.msra.mxu0 0
    %113 = vmatprep.subr.bf16.mxu0 0
    %114 = vmatpush1.bf16.msra.mxu0 0
    %115 = vmatprep.subr.bf16.mxu0 0
    %116 = vmatpush1.bf16.msra.mxu0 0
    %117 = vmatprep.subr.bf16.mxu0 0
    %118 = vmatpush1.bf16.msra.mxu0 0
    %119 = vmatprep.mubr.bf16.mxu0 0
    %120 = vmatmul.mubr.bf16.gmra.mrb[0].mxu0 %v85
    %v121 = vpop.f32.mrb[0].mxu0
    %v122 = vadd.f32 0.0, %v121
    %v123 = vpop.f32.mrb[0].mxu0
    %v124 = vpop.f32.mrb[0].mxu0
    %v125 = vpop.f32.mrb[0].mxu0
    %126 = vdwg.mxu0
    %s127 = scalar_lea.vmem [#allocation2], %s49
    %128 = vst [vmem:[%s127] sm:$0xff] %v122
    %p129 = scmp.eq.s32.totalorder 0, 0
    // Predicated region
    $region30: #{_forward_impl.1} parent=1 // pred_check
      %p130 = pneg %p129
    $region31: #{_forward_impl.1} parent=1 // pred_check_branch
      %132 = sbr.rel (%p130) target = $region33
    $region32: #{_forward_impl.1} parent=1 // pred_region
      %v133 = vld [vmem:[%s4] sm:$0xff]
      %v134 = vld [vmem:[#allocation2] sm:$0xff]
      %v135 = vrot.slane %v134, 4
      %v136 = vadd.f32 %v134, %v135
      %v137 = vrot.slane %v136, 2
      %v138 = vadd.f32 %v136, %v137
      %v139 = vrot.slane %v138, 1
      %v140 = vadd.f32 %v138, %v139
      %v141 = vmul.f32 %v134, %v134
      %v142 = vrot.slane %v141, 4
      %v143 = vadd.f32 %v141, %v142
      %v144 = vrot.slane %v143, 2
      %v145 = vadd.f32 %v143, %v144
      %v146 = vrot.slane %v145, 1
      %v147 = vadd.f32 %v145, %v146
      %v148 = vmul.f32 %v140, 0.125
      %v149 = vmul.f32 %v147, 0.125
      %v150 = vmul.f32 %v148, %v148
      %v151 = vsub.f32 %v149, %v150
      %v152 = vadd.f32 %v151, 1e-05
      %v153 = vrsqrt.pop %v152
      %v154 = vmul.f32 %v133, %v153
      %v155 = vmul.f32 %v148, %v154
      %v157 = vrot.slane %v155, 7
      %v159 = vsub.f32 %v133, %v157
      %v160 = vlaneseq
      %v161 = vshrl.u32 %v160, 7
      %v162 = vsub.s32 0, %v161
      %v163 = vrot.slane %v154, %v162
      %v164 = vmul.f32 %v134, %v163
      %v165 = vlaneseq
      %v166 = vshrl.u32 %v165, 7
      %v167 = vsub.s32 1, %v166
      %v168 = vrot.slane %v159, %v167
      %v169 = vadd.f32 %v164, %v168
      %v170 = vmax.f32 %v169, 0.0
      %v171 = vld [vmem:[%s2] sm:$0xff]
      %v172 = vld [vmem:[%s2 + $0x8] sm:$0xff]
      %v173 = vld [vmem:[%s2 + $0x10] sm:$0xff]
      %v174 = vld [vmem:[%s2 + $0x18] sm:$0xff]
      %v175 = vld [vmem:[%s2 + $0x20] sm:$0xff]
      %v176 = vld [vmem:[%s2 + $0x28] sm:$0xff]
      %v177 = vld [vmem:[%s2 + $0x30] sm:$0xff]
      %v178 = vld [vmem:[%s2 + $0x38] sm:$0xff]
      %v179 = vld [vmem:[%s2 + $0x40] sm:$0xff]
      %v180 = vld [vmem:[%s2 + $0x48] sm:$0xff]
      %v181 = vld [vmem:[%s2 + $0x50] sm:$0xff]
      %v182 = vld [vmem:[%s2 + $0x58] sm:$0xff]
      %v183 = vld [vmem:[%s2 + $0x60] sm:$0xff]
      %v184 = vld [vmem:[%s2 + $0x68] sm:$0xff]
      %v185 = vld [vmem:[%s2 + $0x70] sm:$0xff]
      %v186 = vld [vmem:[%s2 + $0x78] sm:$0xff]
      %187 = vmatprep.subr.mxu0 0.0
      %188 = vmatpush1.msra.mxu0 %v171
      %189 = vmatprep.subr.mxu0 0.0
      %190 = vmatpush1.msra.mxu0 %v172
      %191 = vmatprep.subr.mxu0 0.0
      %192 = vmatpush1.msra.mxu0 %v173
      %193 = vmatprep.subr.mxu0 0.0
      %194 = vmatpush1.msra.mxu0 %v174
      %195 = vmatprep.subr.mxu0 0.0
      %196 = vmatpush1.msra.mxu0 %v175
      %197 = vmatprep.subr.mxu0 0.0
      %198 = vmatpush1.msra.mxu0 %v176
      %199 = vmatprep.subr.mxu0 0.0
      %200 = vmatpush1.msra.mxu0 %v177
      %201 = vmatprep.subr.mxu0 0.0
      %202 = vmatpush1.msra.mxu0 %v178
      %203 = vmatprep.subr.mxu0 0.0
      %204 = vmatpush1.msra.mxu0 %v179
      %205 = vmatprep.subr.mxu0 0.0
      %206 = vmatpush1.msra.mxu0 %v180
      %207 = vmatprep.subr.mxu0 0.0
      %208 = vmatpush1.msra.mxu0 %v181
      %209 = vmatprep.subr.mxu0 0.0
      %210 = vmatpush1.msra.mxu0 %v182
      %211 = vmatprep.subr.mxu0 0.0
      %212 = vmatpush1.msra.mxu0 %v183
      %213 = vmatprep.subr.mxu0 0.0
      %214 = vmatpush1.msra.mxu0 %v184
      %215 = vmatprep.subr.mxu0 0.0
      %216 = vmatpush1.msra.mxu0 %v185
      %217 = vmatprep.subr.mxu0 0.0
      %218 = vmatpush1.msra.mxu0 %v186
      %219 = vmatprep.subr.mxu0 0.0
      %220 = vmatpush1.msra.mxu0 0.0
      %221 = vmatprep.subr.mxu0 0.0
      %222 = vmatpush1.msra.mxu0 0.0
      %223 = vmatprep.subr.mxu0 0.0
      %224 = vmatpush1.msra.mxu0 0.0
      %225 = vmatprep.subr.mxu0 0.0
      %226 = vmatpush1.msra.mxu0 0.0
      %227 = vmatprep.subr.mxu0 0.0
      %228 = vmatpush1.msra.mxu0 0.0
      %229 = vmatprep.subr.mxu0 0.0
      %230 = vmatpush1.msra.mxu0 0.0
      %231 = vmatprep.subr.mxu0 0.0
      %232 = vmatpush1.msra.mxu0 0.0
      %233 = vmatprep.subr.mxu0 0.0
      %234 = vmatpush1.msra.mxu0 0.0
      %235 = vmatprep.subr.mxu0 0.0
      %236 = vmatpush1.msra.mxu0 0.0
      %237 = vmatprep.subr.mxu0 0.0
      %238 = vmatpush1.msra.mxu0 0.0
      %239 = vmatprep.subr.mxu0 0.0
      %240 = vmatpush1.msra.mxu0 0.0
      %241 = vmatprep.subr.mxu0 0.0
      %242 = vmatpush1.msra.mxu0 0.0
      %243 = vmatprep.subr.mxu0 0.0
      %244 = vmatpush1.msra.mxu0 0.0
      %245 = vmatprep.subr.mxu0 0.0
      %246 = vmatpush1.msra.mxu0 0.0
      %247 = vmatprep.subr.mxu0 0.0
      %248 = vmatpush1.msra.mxu0 0.0
      %249 = vmatprep.subr.mxu0 0.0
      %250 = vmatpush1.msra.mxu0 0.0
      %251 = vmatprep.mubr.f32.mxu0 0.0
      %252 = vmatmul.mubr.f32.gmra.mrb[0].mxu0 %v170
      %v253 = vpop.f32.mrb[0].mxu0
      %v254 = vadd.f32 0.0, %v253
      %v255 = vpop.f32.mrb[0].mxu0
      %256 = vdwg.mxu0
      %v257 = vrot.slane %v254, 4
      %v258 = vadd.f32 %v254, %v257
      %v259 = vrot.slane %v258, 2
      %v260 = vadd.f32 %v258, %v259
      %v261 = vrot.slane %v260, 1
      %v262 = vadd.f32 %v260, %v261
      %v263 = vmul.f32 %v254, %v254
      %v264 = vrot.slane %v263, 4
      %v265 = vadd.f32 %v263, %v264
      %v266 = vrot.slane %v265, 2
      %v267 = vadd.f32 %v265, %v266
      %v268 = vrot.slane %v267, 1
      %v269 = vadd.f32 %v267, %v268
      %v270 = vmul.f32 %v262, 0.125
      %v271 = vmul.f32 %v269, 0.125
      %v272 = vmul.f32 %v270, %v270
      %v273 = vsub.f32 %v271, %v272
      %v274 = vadd.f32 %v273, 1e-05
      %v275 = vrsqrt.pop %v274
      %v276 = vmul.f32 %v133, %v275
      %v277 = vmul.f32 %v270, %v276
      %v279 = vrot.slane %v277, 7
      %v281 = vsub.f32 %v133, %v279
      %v282 = vlaneseq
      %v283 = vshrl.u32 %v282, 7
      %v284 = vsub.s32 2, %v283
      %v285 = vrot.slane %v276, %v284
      %v286 = vmul.f32 %v254, %v285
      %v287 = vlaneseq
      %v288 = vshrl.u32 %v287, 7
      %v289 = vsub.s32 3, %v288
      %v290 = vrot.slane %v281, %v289
      %v291 = vadd.f32 %v286, %v290
      %v292 = vmax.f32 %v291, 0.0
      %v293 = vld [vmem:[#allocation5] sm:$0xff]
      %v294 = vld [vmem:[#allocation5 + $0x8] sm:$0xff]
      %v295 = vld [vmem:[#allocation5 + $0x10] sm:$0xff]
      %v296 = vld [vmem:[#allocation5 + $0x18] sm:$0xff]
      %v297 = vld [vmem:[#allocation5 + $0x20] sm:$0xff]
      %v298 = vld [vmem:[#allocation5 + $0x28] sm:$0xff]
      %v299 = vld [vmem:[#allocation5 + $0x30] sm:$0xff]
      %v300 = vld [vmem:[#allocation5 + $0x38] sm:$0xff]
      %v301 = vld [vmem:[#allocation5 + $0x40] sm:$0xff]
      %v302 = vld [vmem:[#allocation5 + $0x48] sm:$0xff]
      %v303 = vld [vmem:[#allocation5 + $0x50] sm:$0xff]
      %v304 = vld [vmem:[#allocation5 + $0x58] sm:$0xff]
      %v305 = vld [vmem:[#allocation5 + $0x60] sm:$0xff]
      %v306 = vld [vmem:[#allocation5 + $0x68] sm:$0xff]
      %v307 = vld [vmem:[#allocation5 + $0x70] sm:$0xff]
      %v308 = vld [vmem:[#allocation5 + $0x78] sm:$0xff]
      %309 = vmatprep.subr.mxu0 0.0
      %310 = vmatpush1.msra.mxu0 %v293
      %311 = vmatprep.subr.mxu0 0.0
      %312 = vmatpush1.msra.mxu0 %v294
      %313 = vmatprep.subr.mxu0 0.0
      %314 = vmatpush1.msra.mxu0 %v295
      %315 = vmatprep.subr.mxu0 0.0
      %316 = vmatpush1.msra.mxu0 %v296
      %317 = vmatprep.subr.mxu0 0.0
      %318 = vmatpush1.msra.mxu0 %v297
      %319 = vmatprep.subr.mxu0 0.0
      %320 = vmatpush1.msra.mxu0 %v298
      %321 = vmatprep.subr.mxu0 0.0
      %322 = vmatpush1.msra.mxu0 %v299
      %323 = vmatprep.subr.mxu0 0.0
      %324 = vmatpush1.msra.mxu0 %v300
      %325 = vmatprep.subr.mxu0 0.0
      %326 = vmatpush1.msra.mxu0 %v301
      %327 = vmatprep.subr.mxu0 0.0
      %328 = vmatpush1.msra.mxu0 %v302
      %329 = vmatprep.subr.mxu0 0.0
      %330 = vmatpush1.msra.mxu0 %v303
      %331 = vmatprep.subr.mxu0 0.0
      %332 = vmatpush1.msra.mxu0 %v304
      %333 = vmatprep.subr.mxu0 0.0
      %334 = vmatpush1.msra.mxu0 %v305
      %335 = vmatprep.subr.mxu0 0.0
      %336 = vmatpush1.msra.mxu0 %v306
      %337 = vmatprep.subr.mxu0 0.0
      %338 = vmatpush1.msra.mxu0 %v307
      %339 = vmatprep.subr.mxu0 0.0
      %340 = vmatpush1.msra.mxu0 %v308
      %341 = vmatprep.subr.mxu0 0.0
      %342 = vmatpush1.msra.mxu0 0.0
      %343 = vmatprep.subr.mxu0 0.0
      %344 = vmatpush1.msra.mxu0 0.0
      %345 = vmatprep.subr.mxu0 0.0
      %346 = vmatpush1.msra.mxu0 0.0
      %347 = vmatprep.subr.mxu0 0.0
      %348 = vmatpush1.msra.mxu0 0.0
      %349 = vmatprep.subr.mxu0 0.0
      %350 = vmatpush1.msra.mxu0 0.0
      %351 = vmatprep.subr.mxu0 0.0
      %352 = vmatpush1.msra.mxu0 0.0
      %353 = vmatprep.subr.mxu0 0.0
      %354 = vmatpush1.msra.mxu0 0.0
      %355 = vmatprep.subr.mxu0 0.0
      %356 = vmatpush1.msra.mxu0 0.0
      %357 = vmatprep.subr.mxu0 0.0
      %358 = vmatpush1.msra.mxu0 0.0
      %359 = vmatprep.subr.mxu0 0.0
      %360 = vmatpush1.msra.mxu0 0.0
      %361 = vmatprep.subr.mxu0 0.0
      %362 = vmatpush1.msra.mxu0 0.0
      %363 = vmatprep.subr.mxu0 0.0
      %364 = vmatpush1.msra.mxu0 0.0
      %365 = vmatprep.subr.mxu0 0.0
      %366 = vmatpush1.msra.mxu0 0.0
      %367 = vmatprep.subr.mxu0 0.0
      %368 = vmatpush1.msra.mxu0 0.0
      %369 = vmatprep.subr.mxu0 0.0
      %370 = vmatpush1.msra.mxu0 0.0
      %371 = vmatprep.subr.mxu0 0.0
      %372 = vmatpush1.msra.mxu0 0.0
      %373 = vmatprep.mubr.f32.mxu0 0.0
      %374 = vmatmul.mubr.f32.gmra.mrb[0].mxu0 %v292
      %v375 = vpop.f32.mrb[0].mxu0
      %v376 = vadd.f32 0.0, %v375
      %v377 = vpop.f32.mrb[0].mxu0
      %378 = vdwg.mxu0
      %v379 = vrot.slane %v376, 4
      %v380 = vadd.f32 %v376, %v379
      %v381 = vrot.slane %v380, 2
      %v382 = vadd.f32 %v380, %v381
      %v383 = vrot.slane %v382, 1
      %v384 = vadd.f32 %v382, %v383
      %v385 = vmul.f32 %v376, %v376
      %v386 = vrot.slane %v385, 4
      %v387 = vadd.f32 %v385, %v386
      %v388 = vrot.slane %v387, 2
      %v389 = vadd.f32 %v387, %v388
      %v390 = vrot.slane %v389, 1
      %v391 = vadd.f32 %v389, %v390
      %v392 = vmul.f32 %v384, 0.125
      %v393 = vmul.f32 %v391, 0.125
      %v394 = vmul.f32 %v392, %v392
      %v395 = vsub.f32 %v393, %v394
      %v396 = vadd.f32 %v395, 1e-05
      %v397 = vrsqrt.pop %v396
      %v398 = vmul.f32 %v133, %v397
      %v399 = vmul.f32 %v392, %v398
      %v401 = vrot.slane %v399, 7
      %v403 = vsub.f32 %v133, %v401
      %v404 = vlaneseq
      %v405 = vshrl.u32 %v404, 7
      %v406 = vsub.s32 4, %v405
      %v407 = vrot.slane %v398, %v406
      %v408 = vmul.f32 %v376, %v407
      %v409 = vlaneseq
      %v410 = vshrl.u32 %v409, 7
      %v411 = vsub.s32 5, %v410
      %v412 = vrot.slane %v403, %v411
      %v413 = vadd.f32 %v408, %v412
      %v414 = vmax.f32 %v413, 0.0
      %v415 = vlaneseq
      %v416 = vand.u32 %v415, 127
      %vm417 = vcmp.lt.s32.totalorder %v416, 10
      %v418 = vsel %vm417, %v414, -inf
      %419 = vmax.xlane.f32.xlu0 %v418
      %v420 = vpop.xlane.xlu0 %419
      %v421 = vsub.f32 %v418, %v420
      %v422 = vmul.f32 %v421, 1.442695
      %v423 = vpow.pop %v422
      %424 = vadd.xlane.f32.xlu0 %v423
      %v425 = vpop.xlane.xlu0 %424
      %v426 = vlog2.pop %v425
      %v427 = vmul.f32 %v426, 0.6931472
      %v428 = vsub.f32 %v421, %v427
      %v429 = vpack.c.bf16 %v428, %v428
      %430 = vst [vmem:[%s5] sm:$0xf] %v429
    $region33: #{_forward_impl.1} parent=1 // pred_fallthru
      _
    // Predicated region
    $region34: #{_forward_impl.1} parent=1 // pred_check
      _
    $region35: #{_forward_impl.1} parent=1 // pred_check_branch
      %432 = sbr.rel (0) target = $region37
    $region36: #{_forward_impl.1} parent=1 // pred_region
      _
    $region37: #{_forward_impl.1} parent=1 // pred_fallthru
      _
    // Predicated region
    $region38: #{_forward_impl.1} parent=1 // pred_check
      _
    $region39: #{_forward_impl.1} parent=1 // pred_check_branch
      %434 = sbr.rel (0) target = $region41
    $region40: #{_forward_impl.1} parent=1 // pred_region
      _
    $region41: #{_forward_impl.1} parent=1 // pred_fallthru
      _
    %435 = vsyncpa [#allocation4], 1
    %436 = vsyncpa [#allocation6], 1

</llo_original>
